<compile_context>
chip_gen: v6e
topology: v6e:2x2x1
jax: 0.10.0
libtpu: 0.0.40
codegen_flags: <defaults>
</compile_context>

<pallas_src>
import jax
import jax.numpy as jnp
from jax.experimental import pallas as pl
from jax.experimental.pallas import tpu as pltpu


# --------------------------------------------------------------------------- #
# Block sizing
# --------------------------------------------------------------------------- #

def _pick_block_rows(num_rows, row_bytes, itemsize, *,
                     target_block_bytes, min_steps=8):
    """Rows per grid step.

    Largest block <= ~target_block_bytes (multi-MiB blocks already sit at ~85% of
    HBM roofline), capped so the grid has >= min_steps steps (auto-pipeline overlap
    and >= 4 blocks per v7x TensorCore), rounded to the dtype's sublane tile so the
    VMEM tiles stay dense.  Caller uses grid = pl.cdiv(num_rows, block_rows); the
    ragged final block (if any) is handled by Pallas.
    """
    q = max(8, 32 // max(1, itemsize))            # 8 rows (f32) / 16 (bf16) / 32 (8-bit)
    br = max(1, target_block_bytes // max(1, row_bytes))
    br = min(br, max(1, pl.cdiv(num_rows, min_steps)))
    if br >= num_rows:
        return num_rows                            # one full-extent block: always legal
    br = max(q, (br // q) * q)
    return min(br, num_rows)


# --------------------------------------------------------------------------- #
# Kernels
# --------------------------------------------------------------------------- #

def _shift_left_lanes(v, s):
    """result[..., i] = v[..., i + s]; wrapped values land only in lanes never read."""
    return jnp.concatenate([v[..., s:], v[..., :s]], axis=-1)


def _maxpool_nchw_kernel(x_ref, o_ref):
    """2x2/2 max pool, native NCHW layout.

    x_ref: (rows, 2*W)   -- each row = one H-pair of image rows, W-major
    o_ref: (rows, Wout)  -- Wout = W // 2
    """
    w = x_ref.shape[-1] // 2
    wout = o_ref.shape[-1]

    # H-pair max: the two image rows of the pair are the two contiguous lane halves.
    h = jnp.maximum(x_ref[:, :w], x_ref[:, w:])                     # (rows, W)

    # W-pair max: neighbours are adjacent lanes; the result for output k is at lane 2k.
    m = jnp.maximum(h, _shift_left_lanes(h, 1))

    # Compact lane 2k -> lane k with a log-shifter: at step b, every element whose
    # remaining shift has bit b set moves left by 2**b.  The destination lanes of
    # step b are exactly those i with bit b set and bit b+1 clear, so the select
    # mask is a pure function of the lane index (the HBM-bound kernel hides this
    # extra VPU/XLU work).
    nsteps = (wout - 1).bit_length()
    if nsteps:
        lane = jax.lax.broadcasted_iota(jnp.int32, (1, w), 1)
        for b in range(nsteps):
            take = ((lane >> b) & 3) == 1
            m = jnp.where(take, _shift_left_lanes(m, 1 << b), m)

    o_ref[...] = m[:, :wout].astype(o_ref.dtype)


def _maxpool_nhwc_kernel(x_ref, o_ref):
    """2x2/2 max pool, channels-last layout (pure VPU, lane-dense C store).

    x_ref: (rows, 2, Wout, 2*C)   o_ref: (rows, Wout, C)
    """
    c = o_ref.shape[-1]
    x = x_ref[...]
    h = jnp.maximum(x[:, 0], x[:, 1])                  # H-pair max   (rows, Wout, 2C)
    o_ref[...] = jnp.maximum(h[..., :c], h[..., c:])   # W-pair max = lane halves


# --------------------------------------------------------------------------- #
# Wrappers
# --------------------------------------------------------------------------- #

def _maxpool_nchw_pallas(x, *, block_rows=None):
    """Native-NCHW fast path.  x: (N, C, H, W) with H, W even."""
    n, c, h, w = x.shape
    hout, wout = h // 2, w // 2
    rows = n * c * hout
    xr = x.reshape(rows, 2 * w)                        # free reshape of row-major NCHW

    itemsize = jnp.dtype(x.dtype).itemsize
    if block_rows is None:
        # ~1 MiB input blocks: the compaction network keeps several full-block
        # temporaries live, so stay conservative vs. v5e's 16 MiB scoped VMEM.
        block_rows = _pick_block_rows(rows, 2 * w * itemsize, itemsize,
                                      target_block_bytes=1 << 20)
    grid = (pl.cdiv(rows, block_rows),)

    out = pl.pallas_call(
        _maxpool_nchw_kernel,
        out_shape=jax.ShapeDtypeStruct((rows, wout), x.dtype),
        grid=grid,
        in_specs=[pl.BlockSpec((block_rows, 2 * w), lambda i: (i, 0))],
        out_specs=pl.BlockSpec((block_rows, wout), lambda i: (i, 0)),
        compiler_params=pltpu.CompilerParams(dimension_semantics=("parallel",)),
        cost_estimate=pl.CostEstimate(
            flops=3 * rows * wout,
            transcendentals=0,
            bytes_accessed=(rows * 2 * w + rows * wout) * itemsize),
    )(xr)
    return out.reshape(n, c, hout, wout)


def downsample_nhwc(x, *, block_rows=None):
    """MaxPool2d(2) for channels-last (N, H, W, C) tensors: zero transposes and
    zero in-kernel lane shuffles -- the preferred layout for a TPU UNet."""
    n, h, w, c = x.shape
    assert h % 2 == 0 and w % 2 == 0, "MaxPool2d(2) here assumes even H, W"
    hout, wout = h // 2, w // 2
    rows = n * hout
    xr = x.reshape(rows, 2, wout, 2 * c)               # free reshape of row-major NHWC

    itemsize = jnp.dtype(x.dtype).itemsize
    row_bytes = 2 * wout * 2 * c * itemsize
    if block_rows is None:
        block_rows = _pick_block_rows(rows, row_bytes, itemsize,
                                      target_block_bytes=2 << 20)
    grid = (pl.cdiv(rows, block_rows),)

    out = pl.pallas_call(
        _maxpool_nhwc_kernel,
        out_shape=jax.ShapeDtypeStruct((rows, wout, c), x.dtype),
        grid=grid,
        in_specs=[pl.BlockSpec((block_rows, 2, wout, 2 * c), lambda i: (i, 0, 0, 0))],
        out_specs=pl.BlockSpec((block_rows, wout, c), lambda i: (i, 0, 0)),
        compiler_params=pltpu.CompilerParams(dimension_semantics=("parallel",)),
        cost_estimate=pl.CostEstimate(
            flops=3 * rows * wout * c,
            transcendentals=0,
            bytes_accessed=(rows * 2 * wout * 2 * c + rows * wout * c) * itemsize),
    )(xr)
    return out.reshape(n, hout, wout, c)


# --------------------------------------------------------------------------- #
# Fast-path feature/correctness probe + public NCHW entry point
# --------------------------------------------------------------------------- #

_NCHW_FAST_PATH_OK = {}


def _nchw_fast_path_ok(dtype, w):
    """One-time probe of the native-NCHW kernel for a given (dtype, W).

    Runs a tiny pooled plane eagerly (also exercising a ragged cdiv grid:
    24 rows with 16-row blocks) and compares bit-exactly against a jnp
    reference; failures (lowering or numerics) route that configuration to
    the safe transpose fallback instead of erroring out.
    """
    key = (jnp.dtype(dtype).name, int(w))
    ok = _NCHW_FAST_PATH_OK.get(key)
    if ok is None:
        try:
            n, c, h = 1, 4, 12
            vals = (jnp.arange(n * c * h * w, dtype=jnp.float32) % 23.0) - 11.0
            probe = vals.astype(dtype).reshape(n, c, h, w)
            got = _maxpool_nchw_pallas(probe, block_rows=16)
            want = probe.reshape(n, c, h // 2, 2, w // 2, 2).max(axis=(3, 5))
            ok = bool(jnp.array_equal(got, want))
        except Exception:
            ok = False
        _NCHW_FAST_PATH_OK[key] = ok
    return ok


def downsample(x):
    """MaxPool2d(2) on an NCHW tensor (the Downsample module's forward)."""
    _, _, h, w = x.shape
    # TODO(synk): PyTorch MaxPool2d(2) floors odd H/W; this kernel requires even
    # H and W (every UNet stage satisfies this).
    assert h % 2 == 0 and w % 2 == 0, "MaxPool2d(2) here assumes even H, W"

    if _nchw_fast_path_ok(x.dtype, w):
        try:
            return _maxpool_nchw_pallas(x)
        except Exception:
            pass  # extremely unlikely once the probe passed; use the safe path
    # Fallback: transpose -> channels-last kernel -> transpose.  Correct everywhere,
    # but ~3x the HBM traffic of the native path.
    y = downsample_nhwc(jnp.transpose(x, (0, 2, 3, 1)))
    return jnp.transpose(y, (0, 3, 1, 2))


# --------------------------------------------------------------------------- #
# Self-test
# --------------------------------------------------------------------------- #

if __name__ == "__main__":
    def ref_pool(a):                                   # nn.MaxPool2d(2) reference (NCHW)
        n, c, h, w = a.shape
        return a.reshape(n, c, h // 2, 2, w // 2, 2).max(axis=(3, 5))

    key = jax.random.PRNGKey(0)
    k0, k1 = jax.random.split(key)

    # 1) module-shaped NCHW f32 case
    x = jax.random.normal(k0, (2, 4, 16, 16), dtype=jnp.float32)
    y = downsample(x)
    jax.block_until_ready(y)
    assert y.shape == (2, 4, 8, 8) and y.dtype == x.dtype
    assert jnp.array_equal(y, ref_pool(x)), "NCHW f32 mismatch vs reference"

    # 2) bf16 preserved end to end
    xb = x.astype(jnp.bfloat16)
    yb = downsample(xb)
    jax.block_until_ready(yb)
    assert yb.dtype == jnp.bfloat16
    assert jnp.array_equal(yb, ref_pool(xb)), "NCHW bf16 mismatch vs reference"

    # 3) rectangular plane, non-power-of-two width, ragged grid on the real call
    x2 = jax.random.normal(k1, (1, 3, 6, 48), dtype=jnp.float32)
    y2 = downsample(x2)
    jax.block_until_ready(y2)
    assert y2.shape == (1, 3, 3, 24)
    assert jnp.array_equal(y2, ref_pool(x2)), "NCHW 6x48 mismatch vs reference"

    # 4) channels-last entry point (no transposes anywhere)
    xn = jnp.transpose(x, (0, 2, 3, 1))
    yn = downsample_nhwc(xn)
    jax.block_until_ready(yn)
    assert jnp.array_equal(jnp.transpose(yn, (0, 3, 1, 2)), ref_pool(x)), "NHWC mismatch"

    print("KERNEL_OK")
</pallas_src>

<mosaic_0001>
module attributes {stable_mosaic.version = 11 : i64} {
  func.func @_maxpool_nchw_kernel(%arg0: i32, %arg1: memref<16x32xf32, #tpu.memory_space<vmem>>, %arg2: memref<16x8xf32, #tpu.memory_space<vmem>>) attributes {dimension_semantics = [#tpu.dimension_semantics<parallel>], iteration_bounds = array<i64: 2>, scalar_prefetch = 0 : i64, scratch_operands = 0 : i64, tpu.core_type = #tpu.core_type<tc>, window_params = [{transform_indices = @transform_0, window_bounds = array<i64: 16, 32>}, {transform_indices = @transform_1, window_bounds = array<i64: 16, 8>}]} {
    %c0 = arith.constant 0 : index
    %c0_0 = arith.constant 0 : index
    %0 = vector.load %arg1[%c0, %c0_0] : memref<16x32xf32, #tpu.memory_space<vmem>>, vector<16x16xf32>
    %c0_1 = arith.constant 0 : index
    %c16 = arith.constant 16 : index
    %1 = vector.load %arg1[%c0_1, %c16] : memref<16x32xf32, #tpu.memory_space<vmem>>, vector<16x16xf32>
    %2 = arith.maximumf %0, %1 : vector<16x16xf32>
    %3 = vector.extract_strided_slice %2 {offsets = [0, 1], sizes = [16, 15], strides = [1, 1]} : vector<16x16xf32> to vector<16x15xf32>
    %4 = vector.extract_strided_slice %2 {offsets = [0, 0], sizes = [16, 1], strides = [1, 1]} : vector<16x16xf32> to vector<16x1xf32>
    %5 = tpu.concatenate %3, %4 in 1 : vector<16x15xf32>, vector<16x1xf32> -> vector<16x16xf32>
    %6 = arith.maximumf %2, %5 : vector<16x16xf32>
    %7 = tpu.iota {dimensions = array<i32: 1>} : vector<1x16xi32>
    %c0_i32 = arith.constant 0 : i32
    %8 = vector.broadcast %c0_i32 : i32 to vector<1x16xi32>
    %9 = arith.shrsi %7, %8 : vector<1x16xi32>
    %c3_i32 = arith.constant 3 : i32
    %10 = vector.broadcast %c3_i32 : i32 to vector<1x16xi32>
    %11 = arith.andi %9, %10 : vector<1x16xi32>
    %c1_i32 = arith.constant 1 : i32
    %12 = vector.broadcast %c1_i32 : i32 to vector<1x16xi32>
    %13 = arith.cmpi eq, %11, %12 : vector<1x16xi32>
    %14 = vector.extract_strided_slice %6 {offsets = [0, 1], sizes = [16, 15], strides = [1, 1]} : vector<16x16xf32> to vector<16x15xf32>
    %15 = vector.extract_strided_slice %6 {offsets = [0, 0], sizes = [16, 1], strides = [1, 1]} : vector<16x16xf32> to vector<16x1xf32>
    %16 = tpu.concatenate %14, %15 in 1 : vector<16x15xf32>, vector<16x1xf32> -> vector<16x16xf32>
    %17 = vector.shape_cast %13 : vector<1x16xi1> to vector<1x16xi1>
    %18 = vector.broadcast %17 : vector<1x16xi1> to vector<16x16xi1>
    %19 = arith.select %18, %16, %6 : vector<16x16xi1>, vector<16x16xf32>
    %c1_i32_2 = arith.constant 1 : i32
    %20 = vector.broadcast %c1_i32_2 : i32 to vector<1x16xi32>
    %21 = arith.shrsi %7, %20 : vector<1x16xi32>
    %c3_i32_3 = arith.constant 3 : i32
    %22 = vector.broadcast %c3_i32_3 : i32 to vector<1x16xi32>
    %23 = arith.andi %21, %22 : vector<1x16xi32>
    %c1_i32_4 = arith.constant 1 : i32
    %24 = vector.broadcast %c1_i32_4 : i32 to vector<1x16xi32>
    %25 = arith.cmpi eq, %23, %24 : vector<1x16xi32>
    %26 = vector.extract_strided_slice %19 {offsets = [0, 2], sizes = [16, 14], strides = [1, 1]} : vector<16x16xf32> to vector<16x14xf32>
    %27 = vector.extract_strided_slice %19 {offsets = [0, 0], sizes = [16, 2], strides = [1, 1]} : vector<16x16xf32> to vector<16x2xf32>
    %28 = tpu.concatenate %26, %27 in 1 : vector<16x14xf32>, vector<16x2xf32> -> vector<16x16xf32>
    %29 = vector.shape_cast %25 : vector<1x16xi1> to vector<1x16xi1>
    %30 = vector.broadcast %29 : vector<1x16xi1> to vector<16x16xi1>
    %31 = arith.select %30, %28, %19 : vector<16x16xi1>, vector<16x16xf32>
    %c2_i32 = arith.constant 2 : i32
    %32 = vector.broadcast %c2_i32 : i32 to vector<1x16xi32>
    %33 = arith.shrsi %7, %32 : vector<1x16xi32>
    %c3_i32_5 = arith.constant 3 : i32
    %34 = vector.broadcast %c3_i32_5 : i32 to vector<1x16xi32>
    %35 = arith.andi %33, %34 : vector<1x16xi32>
    %c1_i32_6 = arith.constant 1 : i32
    %36 = vector.broadcast %c1_i32_6 : i32 to vector<1x16xi32>
    %37 = arith.cmpi eq, %35, %36 : vector<1x16xi32>
    %38 = vector.extract_strided_slice %31 {offsets = [0, 4], sizes = [16, 12], strides = [1, 1]} : vector<16x16xf32> to vector<16x12xf32>
    %39 = vector.extract_strided_slice %31 {offsets = [0, 0], sizes = [16, 4], strides = [1, 1]} : vector<16x16xf32> to vector<16x4xf32>
    %40 = tpu.concatenate %38, %39 in 1 : vector<16x12xf32>, vector<16x4xf32> -> vector<16x16xf32>
    %41 = vector.shape_cast %37 : vector<1x16xi1> to vector<1x16xi1>
    %42 = vector.broadcast %41 : vector<1x16xi1> to vector<16x16xi1>
    %43 = arith.select %42, %40, %31 : vector<16x16xi1>, vector<16x16xf32>
    %44 = vector.extract_strided_slice %43 {offsets = [0, 0], sizes = [16, 8], strides = [1, 1]} : vector<16x16xf32> to vector<16x8xf32>
    %c0_7 = arith.constant 0 : index
    %c0_8 = arith.constant 0 : index
    %45 = vector.load %arg2[%c0_7, %c0_8] : memref<16x8xf32, #tpu.memory_space<vmem>>, vector<16x8xf32>
    tpu.vector_store %arg2[%c0_7, %c0_8], %44 {strides = array<i32>} : memref<16x8xf32, #tpu.memory_space<vmem>>, vector<16x8xf32>,
    return
  }
  func.func @transform_0(%arg0: i32) -> (i32, i32) {
    %c0_i32 = arith.constant 0 : i32
    %c0_i32_0 = arith.constant 0 : i32
    return %arg0, %c0_i32 : i32, i32
  }
  func.func @transform_1(%arg0: i32) -> (i32, i32) {
    %c0_i32 = arith.constant 0 : i32
    %c0_i32_0 = arith.constant 0 : i32
    return %arg0, %c0_i32 : i32, i32
  }
}

module attributes {stable_mosaic.version = 11 : i64} {
  func.func @_maxpool_nhwc_kernel(%arg0: i32, %arg1: memref<8x2x8x8xf32, #tpu.memory_space<vmem>>, %arg2: memref<8x8x4xf32, #tpu.memory_space<vmem>>) attributes {dimension_semantics = [#tpu.dimension_semantics<parallel>], iteration_bounds = array<i64: 2>, scalar_prefetch = 0 : i64, scratch_operands = 0 : i64, tpu.core_type = #tpu.core_type<tc>, window_params = [{transform_indices = @transform_0, window_bounds = array<i64: 8, 2, 8, 8>}, {transform_indices = @transform_1, window_bounds = array<i64: 8, 8, 4>}]} {
    %c0 = arith.constant 0 : index
    %c0_0 = arith.constant 0 : index
    %c0_1 = arith.constant 0 : index
    %c0_2 = arith.constant 0 : index
    %0 = vector.load %arg1[%c0, %c0_0, %c0_1, %c0_2] : memref<8x2x8x8xf32, #tpu.memory_space<vmem>>, vector<8x2x8x8xf32>
    %1 = vector.extract_strided_slice %0 {offsets = [0, 0, 0, 0], sizes = [8, 1, 8, 8], strides = [1, 1, 1, 1]} : vector<8x2x8x8xf32> to vector<8x1x8x8xf32>
    %2 = vector.shape_cast %1 : vector<8x1x8x8xf32> to vector<8x8x8xf32>
    %3 = vector.extract_strided_slice %0 {offsets = [0, 1, 0, 0], sizes = [8, 1, 8, 8], strides = [1, 1, 1, 1]} : vector<8x2x8x8xf32> to vector<8x1x8x8xf32>
    %4 = vector.shape_cast %3 : vector<8x1x8x8xf32> to vector<8x8x8xf32>
    %5 = arith.maximumf %2, %4 : vector<8x8x8xf32>
    %6 = vector.extract_strided_slice %5 {offsets = [0, 0, 0], sizes = [8, 8, 4], strides = [1, 1, 1]} : vector<8x8x8xf32> to vector<8x8x4xf32>
    %7 = vector.extract_strided_slice %5 {offsets = [0, 0, 4], sizes = [8, 8, 4], strides = [1, 1, 1]} : vector<8x8x8xf32> to vector<8x8x4xf32>
    %8 = arith.maximumf %6, %7 : vector<8x8x4xf32>
    %c0_3 = arith.constant 0 : index
    %c0_4 = arith.constant 0 : index
    %c0_5 = arith.constant 0 : index
    %9 = vector.load %arg2[%c0_3, %c0_4, %c0_5] : memref<8x8x4xf32, #tpu.memory_space<vmem>>, vector<8x8x4xf32>
    tpu.vector_store %arg2[%c0_3, %c0_4, %c0_5], %8 {strides = array<i32>} : memref<8x8x4xf32, #tpu.memory_space<vmem>>, vector<8x8x4xf32>,
    return
  }
  func.func @transform_0(%arg0: i32) -> (i32, i32, i32, i32) {
    %c0_i32 = arith.constant 0 : i32
    %c0_i32_0 = arith.constant 0 : i32
    %c0_i32_1 = arith.constant 0 : i32
    %c0_i32_2 = arith.constant 0 : i32
    return %arg0, %c0_i32, %c0_i32_0, %c0_i32_1 : i32, i32, i32, i32
  }
  func.func @transform_1(%arg0: i32) -> (i32, i32, i32) {
    %c0_i32 = arith.constant 0 : i32
    %c0_i32_0 = arith.constant 0 : i32
    %c0_i32_1 = arith.constant 0 : i32
    return %arg0, %c0_i32, %c0_i32_0 : i32, i32, i32
  }
}

</mosaic_0001>

<llo_original>
// kernel: tpu_custom_call.1
$region0: #{tpu_custom_call.1}
  #allocation0 [shape = 'u32[]', space=smem, size = 0x4, offset = 0x4, fixed_abs, tag = 'smem constant byte address 0x4 - core index']
  #allocation1 [shape = 'u32[144,128]{1,0:T(1,128)}', space=vmem, size = 0x12000, scoped, tag = 'internal scratch']
  %s0 = inlined_call_operand.hbm [shape: f32[24,32], index: 0, kind: input, shape index: {}]
  %s1 = inlined_call_operand.vmem [shape: f32[24,8], index: 1, kind: output, shape index: {}]
  %s2 = sld [smem:[#allocation0]]
  $region89: #{tpu_custom_call.1} parent=0
    _
  %s4 = ssub.s32 1, %s2
  %s5 = scalar_select 0, %s4, %s2
  $region1: #{tpu_custom_call.1} parent=0
    #allocation2 [shape = 'u8[16384]{0}', space=vmem, size = 0x4000, scoped, tag = 'input window, operand 0']
    #allocation3 [shape = 's32[2]{0}', space=sflag, size = 0x8, scoped, tag = 'scoped memory for tpu_custom_call.1']
    #allocation4 [shape = 'u8[16384]{0}', space=vmem, size = 0x4000, scoped, tag = 'output window, operand 0']
    %6 = vsyncpa [#allocation3], 0
    %s7 = scalar_lea.sflag [#allocation3], 1
    %8 = vsyncpa %s7, 0
    loop: start=0, step=1, limit=4
    $region2: #{tpu_custom_call.1} parent=1 // loop_pre_header
      _
    $region3: #{tpu_custom_call.1} parent=1 // loop_header
      %s10 = sphi 0, %s14
      %p11 = scmp.ge.s32.totalorder %s10, 4
      %s20 = sphi 0, %s22
      %s23 = sphi 0, %s20
      %s24 = sphi 0, %s23
      %s40 = sphi 0, %s24
      %s46 = sphi 0, %s48
      %s49 = sphi 0, %s46
      %s50 = sphi 0, %s49
      %s66 = sphi 0, %s50
    $region4: #{tpu_custom_call.1} parent=1 // loop_header_branch
      %13 = sbr.rel (%p11) target = $region8
    $region5: #{tpu_custom_call.1} parent=1 // loop_body
      %s15 = ssub.s32 %s10, 1
      %s16 = ssub.s32 %s10, 2
      %s17 = sadd.s32 %s10, 1
      %s18 = ssub.s32 %s10, %s17
      %p19 = scmp.eq.s32.totalorder %s18, 0
      %s21 = sadd.s32 %s20, 1
      %s22 = scalar_select %p19, %s20, %s21
      %p25 = pneg %p19
      %p26 = scmp.eq.s32.totalorder %s10, 1
      %p27 = por %p25, %p26
      %p28 = scmp.ne.s32.totalorder %s20, %s23
      %p29 = scmp.eq.s32.totalorder %s10, 0
      %p30 = por %p28, %p29
      %p31 = scmp.ne.s32.totalorder %s20, %s23
      %p32 = scmp.eq.s32.totalorder %s15, 1
      %p33 = por %p31, %p32
      %p34 = scmp.ne.s32.totalorder %s23, %s24
      %p35 = scmp.eq.s32.totalorder %s15, 0
      %p36 = por %p34, %p35
      %p37 = scmp.ne.s32.totalorder %s23, %s24
      %p38 = scmp.eq.s32.totalorder %s16, 1
      %p39 = por %p37, %p38
      %p41 = scmp.ne.s32.totalorder %s24, %s40
      %p42 = scmp.eq.s32.totalorder %s16, 0
      %p43 = por %p41, %p42
      %s44 = ssub.s32 %s10, %s17
      %p45 = scmp.eq.s32.totalorder %s44, 0
      %s47 = sadd.s32 %s46, 1
      %s48 = scalar_select %p45, %s46, %s47
      %p51 = pneg %p45
      %p52 = scmp.eq.s32.totalorder %s10, 1
      %p53 = por %p51, %p52
      %p54 = scmp.ne.s32.totalorder %s46, %s49
      %p55 = scmp.eq.s32.totalorder %s10, 0
      %p56 = por %p54, %p55
      %p57 = scmp.ne.s32.totalorder %s46, %s49
      %p58 = scmp.eq.s32.totalorder %s15, 1
      %p59 = por %p57, %p58
      %p60 = scmp.ne.s32.totalorder %s49, %s50
      %p61 = scmp.eq.s32.totalorder %s15, 0
      %p62 = por %p60, %p61
      %p63 = scmp.ne.s32.totalorder %s49, %s50
      %p64 = scmp.eq.s32.totalorder %s16, 1
      %p65 = por %p63, %p64
      %p67 = scmp.ne.s32.totalorder %s50, %s66
      %p68 = scmp.eq.s32.totalorder %s16, 0
      %p69 = por %p67, %p68
      %p70 = scmp.le.s32.totalorder 1, %s10
      %p71 = scmp.lt.s32.totalorder %s10, 3
      %p72 = pnand %p70, %p71
      %p73 = pneg %p72
      // Predicated region
      $region9: #{tpu_custom_call.1} parent=5 // pred_check
        _
      $region10: #{tpu_custom_call.1} parent=5 // pred_check_branch
        %75 = sbr.rel (%p72) target = $region12
      $region11: #{tpu_custom_call.1} parent=5 // pred_region
        %s76 = ssub.s32 %s10, 1
      $region12: #{tpu_custom_call.1} parent=5 // pred_fallthru
        _
      %p77 = scmp.lt.s32.totalorder %s10, 2
      // Predicated region
      $region13: #{tpu_custom_call.1} parent=5 // pred_check
        %p78 = pneg %p77
      $region14: #{tpu_custom_call.1} parent=5 // pred_check_branch
        %80 = sbr.rel (%p78) target = $region16
      $region15: #{tpu_custom_call.1} parent=5 // pred_region
        // Predicated region
        $region17: #{tpu_custom_call.1} parent=15 // pred_check
          %p81 = pneg %p30
        $region18: #{tpu_custom_call.1} parent=15 // pred_check_branch
          %83 = sbr.rel (%p81) target = $region20
        $region19: #{tpu_custom_call.1} parent=15 // pred_region
          %s84 = sand.u32 %s20, 1
          %s85 = scalar_lea.sflag [#allocation3], %s84
          %s86 = sand.u32 %s20, 1
          %s87 = smul.addr %s86, 16
          %s88 = scalar_lea.vmem [#allocation2], %s87
          %s89 = smul.u32 2, %s10
          %s90 = ssub.s32 3, %s89
          %p91 = scmp.lt.s32.totalorder %s90, 2
          %s92 = scalar_select %p91, %s90, 2
          %s93 = smul.u32 128, %s92
          %s95 = ssub.s32 256, %s93
          %96 = vsyncadd %s85, %s95
          %p97 = scmp.ne.s32.totalorder 0, %s93
          %s98 = smul.addr %s89, 128
          %s99 = scalar_lea.hbm %s0, %s98
          %s100 = smul.u32 8, %s92
          %s101 = sshll.u32 %s88, 4
          %s102 = int_to_ptr.vmem [resolvable:$true] %s101
          %s103 = sshll.u32 %s100, 4
          %107 = dma.hbm_to_vmem [thread:$0]  (%p97), %s99, %s103, %s102, %s85, 128, 128, 8
        $region20: #{tpu_custom_call.1} parent=15 // pred_fallthru
          _
      $region16: #{tpu_custom_call.1} parent=5 // pred_fallthru
        _
      %p108 = scmp.le.s32.totalorder 1, %s10
      %p109 = scmp.lt.s32.totalorder %s10, 3
      %p110 = pnand %p108, %p109
      %p111 = pneg %p110
      // Predicated region
      $region21: #{tpu_custom_call.1} parent=5 // pred_check
        _
      $region22: #{tpu_custom_call.1} parent=5 // pred_check_branch
        %113 = sbr.rel (%p110) target = $region24
      $region23: #{tpu_custom_call.1} parent=5 // pred_region
        %s114 = ssub.s32 %s10, 1
        %s115 = sand.u32 %s23, 1
        %s116 = scalar_lea.sflag [#allocation3], %s115
        %s117 = sand.u32 %s23, 1
        %s118 = smul.addr %s117, 16
        %s119 = scalar_lea.vmem [#allocation2], %s118
        // Predicated region
        $region25: #{tpu_custom_call.1} parent=23 // pred_check
          %p120 = pneg %p36
        $region26: #{tpu_custom_call.1} parent=23 // pred_check_branch
          %122 = sbr.rel (%p120) target = $region28
        $region27: #{tpu_custom_call.1} parent=23 // pred_region
          %123 = dma.done %s116, 256
        $region28: #{tpu_custom_call.1} parent=23 // pred_fallthru
          _
        %s124 = sand.u32 %s23, 1
        %s125 = scalar_lea.sflag [#allocation3], %s124
        %s126 = sand.u32 %s23, 1
        %s127 = smul.addr %s126, 16
        %s128 = scalar_lea.vmem [#allocation2], %s127
        %p129 = pneg %p36
        %p130 = pneg %p33
        %p131 = pneg %p62
        %p132 = pneg %p59
        %s133 = sand.u32 %s49, 1
        %s134 = sand.u32 %s49, 1
        %s135 = smul.addr %s134, 16
        %s136 = scalar_lea.vmem [#allocation4], %s135
        %s137 = smul.u32 2, %s15
        %s138 = ssub.s32 3, %s137
        %p139 = scmp.lt.s32.totalorder %s138, 2
        %s140 = scalar_select %p139, %s138, 2
        %s141 = smul.u32 128, %s140
        %s142 = smul.u32 2, %s15
        %s143 = ssub.s32 3, %s142
        %p144 = scmp.lt.s32.totalorder %s143, 2
        %s145 = scalar_select %p144, %s143, 2
        %s146 = smul.u32 128, %s145
        %v147 = vld [vmem:[%s119] sm:$0xff]
        %v148 = vld [vmem:[%s119 + $0x8] sm:$0xff]
        %151 = vrot.lane.b32.xlu0 %v147, 112
        %v152 = vpop.permute.xlu0 %151
        %153 = vrot.lane.b32.xlu0 %v148, 112
        %v154 = vpop.permute.xlu0 %153
        %v157 = vmax.f32 %v147, %v152
        %v158 = vmax.f32 %v148, %v154
        %161 = vrot.lane.b32.xlu0 %v157, 127
        %v162 = vpop.permute.xlu0 %161
        %163 = vrot.lane.b32.xlu0 %v158, 127
        %v164 = vpop.permute.xlu0 %163
        %167 = vrot.lane.b32.xlu0 %v157, 15
        %v168 = vpop.permute.xlu0 %167
        %169 = vrot.lane.b32.xlu0 %v158, 15
        %v170 = vpop.permute.xlu0 %169
        %vm173 = vcmask 121856
        %v174 = vsel %vm173, %v162, %v168
        %v175 = vsel %vm173, %v164, %v170
        %v176 = vmax.f32 %v157, %v174
        %v177 = vmax.f32 %v158, %v175
        %v178 = vlaneseq
        %v179 = vand.u32 %v178, 127
        %v180 = vand.u32 %v179, 3
        %vm181 = vcmp.eq.s32.totalorder %v180, 1
        %184 = vrot.lane.b32.xlu0 %v176, 127
        %v185 = vpop.permute.xlu0 %184
        %186 = vrot.lane.b32.xlu0 %v177, 127
        %v187 = vpop.permute.xlu0 %186
        %190 = vrot.lane.b32.xlu0 %v176, 15
        %v191 = vpop.permute.xlu0 %190
        %192 = vrot.lane.b32.xlu0 %v177, 15
        %v193 = vpop.permute.xlu0 %192
        %v196 = vsel %vm173, %v185, %v191
        %v197 = vsel %vm173, %v187, %v193
        %v198 = vsel %vm181, 1, 0
        %vm199 = vcmp.eq.s32.totalorder %v198, 1
        %v200 = vsel %vm199, %v196, %v176
        %v201 = vsel %vm199, %v197, %v177
        %v202 = vshra.s32 %v179, 1
        %v203 = vand.u32 %v202, 3
        %vm204 = vcmp.eq.s32.totalorder %v203, 1
        %207 = vrot.lane.b32.xlu0 %v200, 126
        %v208 = vpop.permute.xlu0 %207
        %209 = vrot.lane.b32.xlu0 %v201, 126
        %v210 = vpop.permute.xlu0 %209
        %213 = vrot.lane.b32.xlu0 %v200, 14
        %v214 = vpop.permute.xlu0 %213
        %215 = vrot.lane.b32.xlu0 %v201, 14
        %v216 = vpop.permute.xlu0 %215
        %vm219 = vcmask 113664
        %v220 = vsel %vm219, %v208, %v214
        %v221 = vsel %vm219, %v210, %v216
        %v222 = vsel %vm204, 1, 0
        %vm223 = vcmp.eq.s32.totalorder %v222, 1
        %v224 = vsel %vm223, %v220, %v200
        %v225 = vsel %vm223, %v221, %v201
        %v226 = vshra.s32 %v179, 2
        %v227 = vand.u32 %v226, 3
        %vm228 = vcmp.eq.s32.totalorder %v227, 1
        %231 = vrot.lane.b32.xlu0 %v224, 124
        %v232 = vpop.permute.xlu0 %231
        %233 = vrot.lane.b32.xlu0 %v225, 124
        %v234 = vpop.permute.xlu0 %233
        %237 = vrot.lane.b32.xlu0 %v224, 12
        %v238 = vpop.permute.xlu0 %237
        %239 = vrot.lane.b32.xlu0 %v225, 12
        %v240 = vpop.permute.xlu0 %239
        %vm243 = vcmask 97280
        %v244 = vsel %vm243, %v232, %v238
        %v245 = vsel %vm243, %v234, %v240
        %v246 = vsel %vm228, 1, 0
        %vm247 = vcmp.eq.s32.totalorder %v246, 1
        %v248 = vsel %vm247, %v244, %v224
        %v249 = vsel %vm247, %v245, %v225
        %vm250 = vcmask 64512
        %251 = vst.msk [vmem:[%s136] sm:$0xff] %vm250, %v248
        %252 = vst.msk [vmem:[%s136 + $0x8] sm:$0xff] %vm250, %v249
        %s253 = sand.u32 %s49, 1
        %s254 = sand.u32 %s49, 1
        %s255 = smul.addr %s254, 16
        %s256 = scalar_lea.vmem [#allocation4], %s255
        // Predicated region
        $region29: #{tpu_custom_call.1} parent=23 // pred_check
          %p257 = pneg %p59
        $region30: #{tpu_custom_call.1} parent=23 // pred_check_branch
          %259 = sbr.rel (%p257) target = $region32
        $region31: #{tpu_custom_call.1} parent=23 // pred_region
          %s260 = smul.u32 2, %s15
          %s261 = ssub.s32 3, %s260
          %p262 = scmp.lt.s32.totalorder %s261, 2
          %s263 = scalar_select %p262, %s261, 2
          %s264 = smul.u32 128, %s263
          %p265 = scmp.ne.s32.totalorder 0, %s264
          %s266 = smul.addr %s260, 8
          %s267 = scalar_lea.vmem %s1, %s266
          // Predicated region
          $region33: #{tpu_custom_call.1} parent=31 // pred_check
            %p268 = pneg %p265
          $region34: #{tpu_custom_call.1} parent=31 // pred_check_branch
            %270 = sbr.rel (%p268) target = $region36
          $region35: #{tpu_custom_call.1} parent=31 // pred_region
            // Predicated region
            $region37: #{tpu_custom_call.1} parent=35 // pred_check
              _
            $region38: #{tpu_custom_call.1} parent=35 // pred_check_branch
              %272 = sbr.rel (0) target = $region40
            $region39: #{tpu_custom_call.1} parent=35 // pred_region
              // Predicated region
              $region59: #{tpu_custom_call.1} parent=39 // pred_check
                _
              $region60: #{tpu_custom_call.1} parent=39 // pred_check_branch
                %324 = sbr.rel (0) target = $region62
              $region61: #{tpu_custom_call.1} parent=39 // pred_region
                %s325 = sshrl.u32 %s263, 1
                // While loop
                $region63: #{tpu_custom_call.1} parent=61 // loop_pre_header
                  _
                $region64: #{tpu_custom_call.1} parent=61 // loop_header
                  %s327 = sphi 0, %s329
                  %p328 = scmp.ge.s32.totalorder %s327, %s325
                  %s332 = sphi 0, %s341
                  %s333 = sphi %s256, %s344
                  %s334 = sphi %s267, %s345
                $region65: #{tpu_custom_call.1} parent=61 // loop_header_branch
                  %331 = sbr.rel (%p328) target = $region69
                $region66: #{tpu_custom_call.1} parent=61 // loop_body
                  %v335 = vld [vmem:[%s333] sm:$0xff]
                  %336 = vst [vmem:[%s334] sm:$0xff] %v335
                  %v337 = vld [vmem:[%s333 + $0x8] sm:$0xff]
                  %338 = vst [vmem:[%s334 + $0x8] sm:$0xff] %v337
                  %s339 = sadd.s32 1, %s332
                  %p340 = scmp.ge.s32.totalorder %s339, %s325
                  %s341 = scalar_select %p340, 0, %s339
                  %s342 = smul.u32 %s341, 16
                  %s343 = smul.u32 %s341, 16
                  %s344 = scalar_lea.vmem %s256, %s342 [#allocation4]
                  %s345 = scalar_lea.vmem %s267, %s343
                $region67: #{tpu_custom_call.1} parent=61 // loop_footer
                  %s329 = sadd.s32 %s327, 1
                $region68: #{tpu_custom_call.1} parent=61 // loop_footer_branch
                  %326 = sbr.rel target = $region64
                $region69: #{tpu_custom_call.1} parent=61 // loop_exit
                  _
                %s346 = sshrl.u32 %s263, 1
                %s347 = sand.u32 %s263, 1
                %s348 = smul.u32 %s346, 2
                %s349 = smul.u32 8, %s348
                %s350 = scalar_lea.vmem %s256, %s349 [#allocation4]
                %s351 = smul.u32 8, %s348
                %s352 = scalar_lea.vmem %s267, %s351
                // While loop
                $region70: #{tpu_custom_call.1} parent=61 // loop_pre_header
                  _
                $region71: #{tpu_custom_call.1} parent=61 // loop_header
                  %s354 = sphi 0, %s356
                  %p355 = scmp.ge.s32.totalorder %s354, %s347
                  %s359 = sphi 0, %s366
                  %s360 = sphi %s350, %s369
                  %s361 = sphi %s352, %s370
                $region72: #{tpu_custom_call.1} parent=61 // loop_header_branch
                  %358 = sbr.rel (%p355) target = $region76
                $region73: #{tpu_custom_call.1} parent=61 // loop_body
                  %v362 = vld [vmem:[%s360] sm:$0xff]
                  %363 = vst [vmem:[%s361] sm:$0xff] %v362
                  %s364 = sadd.s32 1, %s359
                  %p365 = scmp.ge.s32.totalorder %s364, %s347
                  %s366 = scalar_select %p365, 0, %s364
                  %s367 = smul.u32 %s366, 8
                  %s368 = smul.u32 %s366, 8
                  %s369 = scalar_lea.vmem %s350, %s367 [#allocation4]
                  %s370 = scalar_lea.vmem %s352, %s368
                $region74: #{tpu_custom_call.1} parent=61 // loop_footer
                  %s356 = sadd.s32 %s354, 1
                $region75: #{tpu_custom_call.1} parent=61 // loop_footer_branch
                  %353 = sbr.rel target = $region71
                $region76: #{tpu_custom_call.1} parent=61 // loop_exit
                  _
              $region62: #{tpu_custom_call.1} parent=39 // pred_fallthru
                _
              // Predicated region
              $region77: #{tpu_custom_call.1} parent=39 // pred_check
                _
              $region78: #{tpu_custom_call.1} parent=39 // pred_check_branch
                %372 = sbr.rel target = $region80
              $region79: #{tpu_custom_call.1} parent=39 // pred_region
                _
              $region80: #{tpu_custom_call.1} parent=39 // pred_fallthru
                _
            $region40: #{tpu_custom_call.1} parent=35 // pred_fallthru
              _
            // Predicated region
            $region41: #{tpu_custom_call.1} parent=35 // pred_check
              _
            $region42: #{tpu_custom_call.1} parent=35 // pred_check_branch
              %274 = sbr.rel target = $region44
            $region43: #{tpu_custom_call.1} parent=35 // pred_region
              %s276 = ssub.s32 256, 1
              %s277 = sshrl.u32 %s263, 1
              // While loop
              $region45: #{tpu_custom_call.1} parent=43 // loop_pre_header
                _
              $region46: #{tpu_custom_call.1} parent=43 // loop_header
                %s279 = sphi 0, %s281
                %p280 = scmp.ge.s32.totalorder %s279, %s277
                %s284 = sphi 0, %s293
                %s285 = sphi %s256, %s296
                %s286 = sphi %s267, %s297
              $region47: #{tpu_custom_call.1} parent=43 // loop_header_branch
                %283 = sbr.rel (%p280) target = $region51
              $region48: #{tpu_custom_call.1} parent=43 // loop_body
                %v287 = vld [vmem:[%s285] sm:%s276]
                %288 = vst [vmem:[%s286] sm:%s276] %v287
                %v289 = vld [vmem:[%s285 + $0x8] sm:%s276]
                %290 = vst [vmem:[%s286 + $0x8] sm:%s276] %v289
                %s291 = sadd.s32 1, %s284
                %p292 = scmp.ge.s32.totalorder %s291, %s277
                %s293 = scalar_select %p292, 0, %s291
                %s294 = smul.u32 %s293, 16
                %s295 = smul.u32 %s293, 16
                %s296 = scalar_lea.vmem %s256, %s294 [#allocation4]
                %s297 = scalar_lea.vmem %s267, %s295
              $region49: #{tpu_custom_call.1} parent=43 // loop_footer
                %s281 = sadd.s32 %s279, 1
              $region50: #{tpu_custom_call.1} parent=43 // loop_footer_branch
                %278 = sbr.rel target = $region46
              $region51: #{tpu_custom_call.1} parent=43 // loop_exit
                _
              %s298 = sshrl.u32 %s263, 1
              %s299 = sand.u32 %s263, 1
              %s300 = smul.u32 %s298, 2
              %s301 = smul.u32 8, %s300
              %s302 = scalar_lea.vmem %s256, %s301 [#allocation4]
              %s303 = smul.u32 8, %s300
              %s304 = scalar_lea.vmem %s267, %s303
              // While loop
              $region52: #{tpu_custom_call.1} parent=43 // loop_pre_header
                _
              $region53: #{tpu_custom_call.1} parent=43 // loop_header
                %s306 = sphi 0, %s308
                %p307 = scmp.ge.s32.totalorder %s306, %s299
                %s311 = sphi 0, %s318
                %s312 = sphi %s302, %s321
                %s313 = sphi %s304, %s322
              $region54: #{tpu_custom_call.1} parent=43 // loop_header_branch
                %310 = sbr.rel (%p307) target = $region58
              $region55: #{tpu_custom_call.1} parent=43 // loop_body
                %v314 = vld [vmem:[%s312] sm:%s276]
                %315 = vst [vmem:[%s313] sm:%s276] %v314
                %s316 = sadd.s32 1, %s311
                %p317 = scmp.ge.s32.totalorder %s316, %s299
                %s318 = scalar_select %p317, 0, %s316
                %s319 = smul.u32 %s318, 8
                %s320 = smul.u32 %s318, 8
                %s321 = scalar_lea.vmem %s302, %s319 [#allocation4]
                %s322 = scalar_lea.vmem %s304, %s320
              $region56: #{tpu_custom_call.1} parent=43 // loop_footer
                %s308 = sadd.s32 %s306, 1
              $region57: #{tpu_custom_call.1} parent=43 // loop_footer_branch
                %305 = sbr.rel target = $region53
              $region58: #{tpu_custom_call.1} parent=43 // loop_exit
                _
            $region44: #{tpu_custom_call.1} parent=35 // pred_fallthru
              _
          $region36: #{tpu_custom_call.1} parent=31 // pred_fallthru
            _
          %373 = vnop
        $region32: #{tpu_custom_call.1} parent=23 // pred_fallthru
          _
      $region24: #{tpu_custom_call.1} parent=5 // pred_fallthru
        _
      %p374 = scmp.le.s32.totalorder 2, %s10
      // Predicated region
      $region81: #{tpu_custom_call.1} parent=5 // pred_check
        %p375 = pneg %p374
      $region82: #{tpu_custom_call.1} parent=5 // pred_check_branch
        %377 = sbr.rel (%p375) target = $region84
      $region83: #{tpu_custom_call.1} parent=5 // pred_region
        %s378 = ssub.s32 %s10, 2
        // Predicated region
        $region85: #{tpu_custom_call.1} parent=83 // pred_check
          %p379 = pneg %p65
        $region86: #{tpu_custom_call.1} parent=83 // pred_check_branch
          %381 = sbr.rel (%p379) target = $region88
        $region87: #{tpu_custom_call.1} parent=83 // pred_region
          %s382 = sand.u32 %s50, 1
          %s383 = sand.u32 %s50, 1
          %s384 = smul.addr %s383, 16
          %s385 = scalar_lea.vmem [#allocation4], %s384
        $region88: #{tpu_custom_call.1} parent=83 // pred_fallthru
          _
      $region84: #{tpu_custom_call.1} parent=5 // pred_fallthru
        _
    $region6: #{tpu_custom_call.1} parent=1 // loop_footer
      %s14 = sadd.s32 1, %s10
    $region7: #{tpu_custom_call.1} parent=1 // loop_footer_branch
      %9 = sbr.rel target = $region3
    $region8: #{tpu_custom_call.1} parent=1 // loop_exit
      _
    %386 = vsyncpa [#allocation3], 1
    %s387 = scalar_lea.sflag [#allocation3], 1
    %388 = vsyncpa %s387, 1

// kernel: tpu_custom_call.1
$region0: #{tpu_custom_call.1}
  #allocation0 [shape = 'u32[]', space=smem, size = 0x4, offset = 0x4, fixed_abs, tag = 'smem constant byte address 0x4 - core index']
  #allocation1 [shape = 'u32[144,128]{1,0:T(1,128)}', space=vmem, size = 0x12000, scoped, tag = 'internal scratch']
  %s0 = inlined_call_operand.vmem [shape: f32[16,2,8,8], index: 0, kind: input, shape index: {}]
  %s1 = inlined_call_operand.vmem [shape: f32[16,8,4], index: 1, kind: output, shape index: {}]
  %s2 = sld [smem:[#allocation0]]
  $region37: #{tpu_custom_call.1} parent=0
    _
  %s4 = ssub.s32 1, %s2
  %s5 = scalar_select 0, %s4, %s2
  loop: start=0, step=1, limit=4
  $region2: #{tpu_custom_call.1} parent=0 // loop_pre_header
    _
  $region3: #{tpu_custom_call.1} parent=0 // loop_header
    %s7 = sphi 0, %s11
    %p8 = scmp.ge.s32.totalorder %s7, 4
    %s17 = sphi 0, %s19
    %s20 = sphi 0, %s17
    %s21 = sphi 0, %s20
    %s37 = sphi 0, %s21
    %s43 = sphi 0, %s45
    %s46 = sphi 0, %s43
    %s47 = sphi 0, %s46
    %s63 = sphi 0, %s47
  $region4: #{tpu_custom_call.1} parent=0 // loop_header_branch
    %10 = sbr.rel (%p8) target = $region8
  $region5: #{tpu_custom_call.1} parent=0 // loop_body
    %s12 = ssub.s32 %s7, 1
    %s13 = ssub.s32 %s7, 2
    %s14 = sadd.s32 %s7, 1
    %s15 = ssub.s32 %s7, %s14
    %p16 = scmp.eq.s32.totalorder %s15, 0
    %s18 = sadd.s32 %s17, 1
    %s19 = scalar_select %p16, %s17, %s18
    %p22 = pneg %p16
    %p23 = scmp.eq.s32.totalorder %s7, 1
    %p24 = por %p22, %p23
    %p25 = scmp.ne.s32.totalorder %s17, %s20
    %p26 = scmp.eq.s32.totalorder %s7, 0
    %p27 = por %p25, %p26
    %p28 = scmp.ne.s32.totalorder %s17, %s20
    %p29 = scmp.eq.s32.totalorder %s12, 1
    %p30 = por %p28, %p29
    %p31 = scmp.ne.s32.totalorder %s20, %s21
    %p32 = scmp.eq.s32.totalorder %s12, 0
    %p33 = por %p31, %p32
    %p34 = scmp.ne.s32.totalorder %s20, %s21
    %p35 = scmp.eq.s32.totalorder %s13, 1
    %p36 = por %p34, %p35
    %p38 = scmp.ne.s32.totalorder %s21, %s37
    %p39 = scmp.eq.s32.totalorder %s13, 0
    %p40 = por %p38, %p39
    %s41 = ssub.s32 %s7, %s14
    %p42 = scmp.eq.s32.totalorder %s41, 0
    %s44 = sadd.s32 %s43, 1
    %s45 = scalar_select %p42, %s43, %s44
    %p48 = pneg %p42
    %p49 = scmp.eq.s32.totalorder %s7, 1
    %p50 = por %p48, %p49
    %p51 = scmp.ne.s32.totalorder %s43, %s46
    %p52 = scmp.eq.s32.totalorder %s7, 0
    %p53 = por %p51, %p52
    %p54 = scmp.ne.s32.totalorder %s43, %s46
    %p55 = scmp.eq.s32.totalorder %s12, 1
    %p56 = por %p54, %p55
    %p57 = scmp.ne.s32.totalorder %s46, %s47
    %p58 = scmp.eq.s32.totalorder %s12, 0
    %p59 = por %p57, %p58
    %p60 = scmp.ne.s32.totalorder %s46, %s47
    %p61 = scmp.eq.s32.totalorder %s13, 1
    %p62 = por %p60, %p61
    %p64 = scmp.ne.s32.totalorder %s47, %s63
    %p65 = scmp.eq.s32.totalorder %s13, 0
    %p66 = por %p64, %p65
    %p67 = scmp.le.s32.totalorder 1, %s7
    %p68 = scmp.lt.s32.totalorder %s7, 3
    %p69 = pnand %p67, %p68
    %p70 = pneg %p69
    // Predicated region
    $region9: #{tpu_custom_call.1} parent=5 // pred_check
      _
    $region10: #{tpu_custom_call.1} parent=5 // pred_check_branch
      %72 = sbr.rel (%p69) target = $region12
    $region11: #{tpu_custom_call.1} parent=5 // pred_region
      %s73 = ssub.s32 %s7, 1
    $region12: #{tpu_custom_call.1} parent=5 // pred_fallthru
      _
    %p74 = scmp.lt.s32.totalorder %s7, 2
    // Predicated region
    $region13: #{tpu_custom_call.1} parent=5 // pred_check
      %p75 = pneg %p74
    $region14: #{tpu_custom_call.1} parent=5 // pred_check_branch
      %77 = sbr.rel (%p75) target = $region16
    $region15: #{tpu_custom_call.1} parent=5 // pred_region
      // Predicated region
      $region17: #{tpu_custom_call.1} parent=15 // pred_check
        %p78 = pneg %p27
      $region18: #{tpu_custom_call.1} parent=15 // pred_check_branch
        %80 = sbr.rel (%p78) target = $region20
      $region19: #{tpu_custom_call.1} parent=15 // pred_region
        %s81 = smul.u32 8, %s7
        %p82 = scmp.lt.s32.totalorder %s81, 15
        %s83 = scalar_select %p82, %s81, 15
        %s84 = smul.addr %s83, 2
        %s85 = smul.addr %s84, 8
        %s86 = scalar_lea.vmem %s0, %s85
        %s87 = smul.u32 8, %s7
      $region20: #{tpu_custom_call.1} parent=15 // pred_fallthru
        _
    $region16: #{tpu_custom_call.1} parent=5 // pred_fallthru
      _
    %p88 = scmp.le.s32.totalorder 1, %s7
    %p89 = scmp.lt.s32.totalorder %s7, 3
    %p90 = pnand %p88, %p89
    %p91 = pneg %p90
    // Predicated region
    $region21: #{tpu_custom_call.1} parent=5 // pred_check
      _
    $region22: #{tpu_custom_call.1} parent=5 // pred_check_branch
      %93 = sbr.rel (%p90) target = $region24
    $region23: #{tpu_custom_call.1} parent=5 // pred_region
      %s94 = ssub.s32 %s7, 1
      %s95 = smul.u32 8, %s12
      %p96 = scmp.lt.s32.totalorder %s95, 15
      %s97 = scalar_select %p96, %s95, 15
      %s98 = smul.addr %s97, 2
      %s99 = smul.addr %s98, 8
      %s100 = scalar_lea.vmem %s0, %s99
      %p101 = pneg %p33
      %p102 = pneg %p30
      %p103 = pneg %p59
      %p104 = pneg %p56
      %s105 = smul.u32 8, %s12
      %p106 = scmp.lt.s32.totalorder %s105, 15
      %s107 = scalar_select %p106, %s105, 15
      %s108 = smul.addr %s107, 8
      %s109 = scalar_lea.vmem %s1, %s108
      %s110 = smul.u32 8, %s12
      %p111 = scmp.lt.s32.totalorder %s110, 15
      %s112 = scalar_select %p111, %s110, 15
      %s113 = smul.addr %s112, 2
      %s114 = smul.addr %s113, 8
      %s115 = scalar_lea.vmem %s0, %s114
      %s116 = smul.u32 8, %s12
      %s117 = smul.u32 8, %s12
      %p118 = scmp.lt.s32.totalorder %s117, 15
      %s119 = scalar_select %p118, %s117, 15
      %s120 = smul.addr %s119, 8
      %s121 = scalar_lea.vmem %s1, %s120
      %s122 = smul.u32 8, %s12
      %v123 = vld [vmem:[%s115] sm:$0xff]
      %v124 = vld [vmem:[%s115 + $0x8] sm:$0xff]
      %v125 = vld [vmem:[%s115 + $0x10] sm:$0xff]
      %v126 = vld [vmem:[%s115 + $0x18] sm:$0xff]
      %v127 = vld [vmem:[%s115 + $0x20] sm:$0xff]
      %v128 = vld [vmem:[%s115 + $0x28] sm:$0xff]
      %v129 = vld [vmem:[%s115 + $0x30] sm:$0xff]
      %v130 = vld [vmem:[%s115 + $0x38] sm:$0xff]
      %v131 = vld [vmem:[%s115 + $0x40] sm:$0xff]
      %v132 = vld [vmem:[%s115 + $0x48] sm:$0xff]
      %v133 = vld [vmem:[%s115 + $0x50] sm:$0xff]
      %v134 = vld [vmem:[%s115 + $0x58] sm:$0xff]
      %v135 = vld [vmem:[%s115 + $0x60] sm:$0xff]
      %v136 = vld [vmem:[%s115 + $0x68] sm:$0xff]
      %v137 = vld [vmem:[%s115 + $0x70] sm:$0xff]
      %v138 = vld [vmem:[%s115 + $0x78] sm:$0xff]
      %v139 = vmax.f32 %v123, %v124
      %v140 = vmax.f32 %v125, %v126
      %v141 = vmax.f32 %v127, %v128
      %v142 = vmax.f32 %v129, %v130
      %v143 = vmax.f32 %v131, %v132
      %v144 = vmax.f32 %v133, %v134
      %v145 = vmax.f32 %v135, %v136
      %v146 = vmax.f32 %v137, %v138
      %155 = vrot.lane.b32.xlu0 %v139, 124
      %v156 = vpop.permute.xlu0 %155
      %157 = vrot.lane.b32.xlu0 %v140, 124
      %v158 = vpop.permute.xlu0 %157
      %159 = vrot.lane.b32.xlu0 %v141, 124
      %v160 = vpop.permute.xlu0 %159
      %161 = vrot.lane.b32.xlu0 %v142, 124
      %v162 = vpop.permute.xlu0 %161
      %163 = vrot.lane.b32.xlu0 %v143, 124
      %v164 = vpop.permute.xlu0 %163
      %165 = vrot.lane.b32.xlu0 %v144, 124
      %v166 = vpop.permute.xlu0 %165
      %167 = vrot.lane.b32.xlu0 %v145, 124
      %v168 = vpop.permute.xlu0 %167
      %169 = vrot.lane.b32.xlu0 %v146, 124
      %v170 = vpop.permute.xlu0 %169
      %v179 = vmax.f32 %v139, %v156
      %v180 = vmax.f32 %v140, %v158
      %v181 = vmax.f32 %v141, %v160
      %v182 = vmax.f32 %v142, %v162
      %v183 = vmax.f32 %v143, %v164
      %v184 = vmax.f32 %v144, %v166
      %v185 = vmax.f32 %v145, %v168
      %v186 = vmax.f32 %v146, %v170
      %vm187 = vcmask 31744
      %188 = vst.msk [vmem:[%s121] sm:$0xff] %vm187, %v179
      %189 = vst.msk [vmem:[%s121 + $0x8] sm:$0xff] %vm187, %v180
      %190 = vst.msk [vmem:[%s121 + $0x10] sm:$0xff] %vm187, %v181
      %191 = vst.msk [vmem:[%s121 + $0x18] sm:$0xff] %vm187, %v182
      %192 = vst.msk [vmem:[%s121 + $0x20] sm:$0xff] %vm187, %v183
      %193 = vst.msk [vmem:[%s121 + $0x28] sm:$0xff] %vm187, %v184
      %194 = vst.msk [vmem:[%s121 + $0x30] sm:$0xff] %vm187, %v185
      %195 = vst.msk [vmem:[%s121 + $0x38] sm:$0xff] %vm187, %v186
      %s196 = smul.u32 8, %s12
      %p197 = scmp.lt.s32.totalorder %s196, 15
      %s198 = scalar_select %p197, %s196, 15
      %s199 = smul.addr %s198, 8
      %s200 = scalar_lea.vmem %s1, %s199
      // Predicated region
      $region25: #{tpu_custom_call.1} parent=23 // pred_check
        %p201 = pneg %p56
      $region26: #{tpu_custom_call.1} parent=23 // pred_check_branch
        %203 = sbr.rel (%p201) target = $region28
      $region27: #{tpu_custom_call.1} parent=23 // pred_region
        %s204 = smul.u32 8, %s12
      $region28: #{tpu_custom_call.1} parent=23 // pred_fallthru
        _
    $region24: #{tpu_custom_call.1} parent=5 // pred_fallthru
      _
    %p205 = scmp.le.s32.totalorder 2, %s7
    // Predicated region
    $region29: #{tpu_custom_call.1} parent=5 // pred_check
      %p206 = pneg %p205
    $region30: #{tpu_custom_call.1} parent=5 // pred_check_branch
      %208 = sbr.rel (%p206) target = $region32
    $region31: #{tpu_custom_call.1} parent=5 // pred_region
      %s209 = ssub.s32 %s7, 2
      // Predicated region
      $region33: #{tpu_custom_call.1} parent=31 // pred_check
        %p210 = pneg %p62
      $region34: #{tpu_custom_call.1} parent=31 // pred_check_branch
        %212 = sbr.rel (%p210) target = $region36
      $region35: #{tpu_custom_call.1} parent=31 // pred_region
        %s213 = smul.u32 8, %s13
        %p214 = scmp.lt.s32.totalorder %s213, 15
        %s215 = scalar_select %p214, %s213, 15
        %s216 = smul.addr %s215, 8
        %s217 = scalar_lea.vmem %s1, %s216
      $region36: #{tpu_custom_call.1} parent=31 // pred_fallthru
        _
    $region32: #{tpu_custom_call.1} parent=5 // pred_fallthru
      _
  $region6: #{tpu_custom_call.1} parent=0 // loop_footer
    %s11 = sadd.s32 1, %s7
  $region7: #{tpu_custom_call.1} parent=0 // loop_footer_branch
    %6 = sbr.rel target = $region3
  $region8: #{tpu_custom_call.1} parent=0 // loop_exit
    _

</llo_original>
